<compile_context>
chip_gen: v7x
topology: tpu7x:2x2x1
jax: 0.10.0
libtpu: 0.0.40
codegen_flags: <defaults>
</compile_context>

<pallas_src>
import functools

import jax
import jax.numpy as jnp
from jax.experimental import pallas as pl
from jax.experimental.pallas import tpu as pltpu


_SQRT_2_OVER_PI = 0.7978845608028654


def _gelu_tanh(x):
    # OpenAI gelu (matches torch gelu_impl exactly, in f32).
    return 0.5 * x * (1.0 + jnp.tanh(_SQRT_2_OVER_PI * x * (1.0 + 0.044715 * x * x)))


def bert_mlp_kernel(x_ref, w0_ref, b0_ref, w1_ref, b1_ref, g_ref, beta_ref,
                    o_ref, *, eps, ic):
    """Fused MLP for one (tm, H) row tile, intermediate dim chunked by `ic`."""
    x = x_ref[...]
    x_f32 = x.astype(jnp.float32)            # residual / LayerNorm precision
    x_bf16 = x.astype(jnp.bfloat16)          # MXU operand

    # Hoist small-parameter loads once (f32).
    b1f = b1_ref[...].astype(jnp.float32)    # (1, H)
    gf = g_ref[...].astype(jnp.float32)      # (1, H)
    bf = beta_ref[...].astype(jnp.float32)   # (1, H)

    num_chunks = w0_ref.shape[1] // ic       # static; wrapper enforces ic | I

    # b1 folded into the residual term; y accumulates the layer_1 partials.
    y = x_f32 + b1f                          # (tm, H) f32

    # Static chunk loop: static ref slices are free, and all chunks live in one
    # basic block so the scheduler can overlap chunk c's GELU / bf16 cast
    # (VPU/EUP) with the vmatmul work of neighbouring chunks (MXU).
    for c in range(num_chunks):
        lo = c * ic
        w0_c = w0_ref[:, lo:lo + ic]                          # (H, ic) bf16
        b0_c = b0_ref[:, lo:lo + ic].astype(jnp.float32)      # (1, ic)
        h = jnp.dot(x_bf16, w0_c, preferred_element_type=jnp.float32) + b0_c
        h = _gelu_tanh(h)
        w1_c = w1_ref[lo:lo + ic, :]                          # (ic, H) bf16
        y = y + jnp.dot(h.astype(jnp.bfloat16), w1_c,
                        preferred_element_type=jnp.float32)

    # LayerNorm in f32.
    mean = jnp.mean(y, axis=-1, keepdims=True)
    cen = y - mean
    var = jnp.mean(cen * cen, axis=-1, keepdims=True)
    out = cen * jax.lax.rsqrt(var + eps) * gf + bf

    o_ref[...] = out.astype(o_ref.dtype)


def _round_up(n, m):
    return ((n + m - 1) // m) * m


def _cdiv(a, b):
    return -(-a // b)


def _tpu_vmem_capacity_bytes():
    try:
        return int(pltpu.get_tpu_info().vmem_capacity_bytes)
    except Exception:
        return None


def _default_vmem_limit_bytes():
    phys = _tpu_vmem_capacity_bytes()
    if phys is None:
        # Conservative fallback: safe even on the 64 MiB (v7x) generation.
        return 40 * 1024 * 1024
    return min(phys * 3 // 4, 112 * 1024 * 1024)


def _default_row_tile():
    phys = _tpu_vmem_capacity_bytes()
    # 512 rows per weight-resident pass on the 128 MiB VMEM generation
    # (v5e/v6e); 256 on the 64 MiB generation (v7x) / unknown.
    if phys is not None and phys >= 96 * 1024 * 1024:
        return 512
    return 256


def _pick_intermediate_chunk(intermediate_dim):
    for ic in (512, 256, 128):
        if intermediate_dim % ic == 0:
            return ic
    return intermediate_dim


def bert_mlp_1d(x, w0, b0, w1, b1, gamma, beta, *, eps=1e-5, tm=None,
                vmem_limit_bytes=None, intermediate_chunk=None):
    """Fused BertMLP1D forward.

    x: [B, S, H]; w0: [H, I]; b0: [1, I]; w1: [I, H]; b1/gamma/beta: [1, H].
    Weights are used as bf16 MXU operands with f32 accumulation; pass them
    already cast to bf16 (cast once at parameter setup) so no per-call HBM
    convert pass is issued.
    """
    B, S, H = x.shape
    I = w0.shape[1]
    M = B * S

    if tm is None:
        tm = _default_row_tile()
    assert tm % 8 == 0, "tm must be a multiple of the 8-sublane tile"

    # Clamp the row tile to the problem size and keep >=2 grid steps so the
    # 'parallel' axis can span both v7x TensorCores (no-op on 1-TC chips).
    tm_eff = min(tm, _round_up(M, 8))
    if M > 8:
        tm_eff = min(tm_eff, _round_up(_cdiv(M, 2), 8))
    grid_m = _cdiv(M, tm_eff)

    if intermediate_chunk is None:
        intermediate_chunk = _pick_intermediate_chunk(I)
    assert I % intermediate_chunk == 0

    if vmem_limit_bytes is None:
        vmem_limit_bytes = _default_vmem_limit_bytes()

    # No pad / slice round-trip: Pallas masks the ragged last row block, so
    # out-of-range rows are computed on garbage but never stored.
    x2 = x.reshape(M, H)

    # bf16 MXU operands (half the HBM->VMEM traffic and resident VMEM).
    # No-op when the caller already hoisted the cast to parameter setup.
    w0_bf = w0 if w0.dtype == jnp.bfloat16 else w0.astype(jnp.bfloat16)
    w1_bf = w1 if w1.dtype == jnp.bfloat16 else w1.astype(jnp.bfloat16)
    # TODO(synk): for hidden sizes where 2*H*I bf16 weights exceed the scoped
    # VMEM limit (v7x, ~>32-40 MiB), switch to an I-tiled weight pipeline
    # (second 'arbitrary' grid axis with a (tm, H) accumulator scratch).

    kernel = functools.partial(bert_mlp_kernel, eps=eps, ic=intermediate_chunk)

    bytes_accessed = (
        M * H * x.dtype.itemsize                     # x in
        + w0_bf.size * 2 + w1_bf.size * 2            # bf16 weights (resident)
        + (b0.size + b1.size + gamma.size + beta.size) * 4
        + M * H * x.dtype.itemsize                   # out
    )
    cost = pl.CostEstimate(
        flops=int(4 * M * H * I),                    # two matmuls
        transcendentals=int(M * I + M),              # GELU tanh + per-row rsqrt
        bytes_accessed=int(bytes_accessed),
    )

    # Constant-index weight blocks: single-buffer them (double-buffering a
    # (0,0)-indexed block only doubles its VMEM footprint).
    resident = pl.Buffered(1)

    out = pl.pallas_call(
        kernel,
        out_shape=jax.ShapeDtypeStruct((M, H), x.dtype),
        grid_spec=pltpu.PrefetchScalarGridSpec(
            num_scalar_prefetch=0,
            grid=(grid_m,),
            in_specs=[
                pl.BlockSpec((tm_eff, H), lambda i: (i, 0)),   # x row tile
                pl.BlockSpec((H, I), lambda i: (0, 0),
                             pipeline_mode=resident),          # W0 (bf16)
                pl.BlockSpec((1, I), lambda i: (0, 0)),        # b0
                pl.BlockSpec((I, H), lambda i: (0, 0),
                             pipeline_mode=resident),          # W1 (bf16)
                pl.BlockSpec((1, H), lambda i: (0, 0)),        # b1
                pl.BlockSpec((1, H), lambda i: (0, 0)),        # gamma
                pl.BlockSpec((1, H), lambda i: (0, 0)),        # beta
            ],
            out_specs=pl.BlockSpec((tm_eff, H), lambda i: (i, 0)),
        ),
        compiler_params=pltpu.CompilerParams(
            dimension_semantics=("parallel",),
            vmem_limit_bytes=int(vmem_limit_bytes),
        ),
        cost_estimate=cost,
    )(x2, w0_bf, b0, w1_bf, b1, gamma, beta)

    return out.reshape(B, S, H)


def bert_mlp_1d_ref(x, w0, b0, w1, b1, gamma, beta, eps=1e-5):
    # Pure-JAX reference mirroring the kernel's numerics:
    # bf16 MXU operands, f32 accumulation, f32 GELU/residual/LayerNorm.
    B, S, H = x.shape
    xf = x.reshape(-1, H).astype(jnp.float32)
    h = jnp.dot(xf.astype(jnp.bfloat16), w0.astype(jnp.bfloat16),
                preferred_element_type=jnp.float32) + b0.astype(jnp.float32)
    h = _gelu_tanh(h)
    y = jnp.dot(h.astype(jnp.bfloat16), w1.astype(jnp.bfloat16),
                preferred_element_type=jnp.float32) + b1.astype(jnp.float32)
    r = y + xf
    mean = jnp.mean(r, axis=-1, keepdims=True)
    var = jnp.mean((r - mean) ** 2, axis=-1, keepdims=True)
    o = ((r - mean) * jax.lax.rsqrt(var + eps) * gamma.astype(jnp.float32)
         + beta.astype(jnp.float32))
    return o.astype(x.dtype).reshape(B, S, H)


if __name__ == "__main__":
    # Small shapes consistent with the module: tokens = B*S, hidden H,
    # intermediate = H * mlp_ratio.
    B, S, H = 2, 8, 32
    mlp_ratio = 4.0
    I = int(H * mlp_ratio)
    eps = 1e-5

    key = jax.random.PRNGKey(0)
    kx, kw0, kb0, kw1, kb1 = jax.random.split(key, 5)

    x = jax.random.normal(kx, (B, S, H), dtype=jnp.float32)

    # Deterministic synthetic parameters (shapes from Linear1D_Col / Linear1D_Row
    # / LayerNorm1D in the module __init__); stored as [in, out].
    w0 = jax.random.normal(kw0, (H, I), dtype=jnp.float32) * (1.0 / H) ** 0.5
    b0 = jax.random.normal(kb0, (1, I), dtype=jnp.float32) * 0.02
    w1 = jax.random.normal(kw1, (I, H), dtype=jnp.float32) * (1.0 / I) ** 0.5
    b1 = jax.random.normal(kb1, (1, H), dtype=jnp.float32) * 0.02
    gamma = jnp.ones((1, H), dtype=jnp.float32)
    beta = jnp.zeros((1, H), dtype=jnp.float32)

    # Hoist the bf16 weight cast out of the per-call path (done once at
    # parameter setup, as in real use).
    w0_bf = jax.block_until_ready(w0.astype(jnp.bfloat16))
    w1_bf = jax.block_until_ready(w1.astype(jnp.bfloat16))

    out = bert_mlp_1d(x, w0_bf, b0, w1_bf, b1, gamma, beta, eps=eps)
    out = jax.block_until_ready(out)

    ref = bert_mlp_1d_ref(x, w0, b0, w1, b1, gamma, beta, eps=eps)
    assert out.shape == (B, S, H)
    assert jnp.allclose(out, ref, atol=1e-3, rtol=1e-3), "mismatch vs JAX reference"

    print("KERNEL_OK")
</pallas_src>

<mosaic_0001>
module attributes {stable_mosaic.version = 11 : i64} {
  func.func @bert_mlp_kernel(%arg0: i32, %arg1: memref<8x32xf32, #tpu.memory_space<vmem>>, %arg2: memref<32x128xbf16, #tpu.memory_space<vmem>>, %arg3: memref<1x128xf32, #tpu.memory_space<vmem>>, %arg4: memref<128x32xbf16, #tpu.memory_space<vmem>>, %arg5: memref<1x32xf32, #tpu.memory_space<vmem>>, %arg6: memref<1x32xf32, #tpu.memory_space<vmem>>, %arg7: memref<1x32xf32, #tpu.memory_space<vmem>>, %arg8: memref<8x32xf32, #tpu.memory_space<vmem>>) attributes {dimension_semantics = [#tpu.dimension_semantics<parallel>], iteration_bounds = array<i64: 2>, scalar_prefetch = 0 : i64, scratch_operands = 0 : i64, tpu.core_type = #tpu.core_type<tc>, window_params = [{transform_indices = @transform_0, window_bounds = array<i64: 8, 32>}, {pipeline_mode = #tpu.pipeline_mode<synchronous>, transform_indices = @transform_1, window_bounds = array<i64: 32, 128>}, {pipeline_mode = #tpu.pipeline_mode<synchronous>, transform_indices = @transform_2, window_bounds = array<i64: 1, 128>}, {pipeline_mode = #tpu.pipeline_mode<synchronous>, transform_indices = @transform_3, window_bounds = array<i64: 128, 32>}, {pipeline_mode = #tpu.pipeline_mode<synchronous>, transform_indices = @transform_4, window_bounds = array<i64: 1, 32>}, {pipeline_mode = #tpu.pipeline_mode<synchronous>, transform_indices = @transform_5, window_bounds = array<i64: 1, 32>}, {pipeline_mode = #tpu.pipeline_mode<synchronous>, transform_indices = @transform_6, window_bounds = array<i64: 1, 32>}, {transform_indices = @transform_7, window_bounds = array<i64: 8, 32>}]} {
    %c0 = arith.constant 0 : index
    %c0_0 = arith.constant 0 : index
    %0 = vector.load %arg1[%c0, %c0_0] : memref<8x32xf32, #tpu.memory_space<vmem>>, vector<8x32xf32>
    %1 = arith.truncf %0 : vector<8x32xf32> to vector<8x32xbf16>
    %c0_1 = arith.constant 0 : index
    %c0_2 = arith.constant 0 : index
    %2 = vector.load %arg5[%c0_1, %c0_2] : memref<1x32xf32, #tpu.memory_space<vmem>>, vector<1x32xf32>
    %c0_3 = arith.constant 0 : index
    %c0_4 = arith.constant 0 : index
    %3 = vector.load %arg6[%c0_3, %c0_4] : memref<1x32xf32, #tpu.memory_space<vmem>>, vector<1x32xf32>
    %c0_5 = arith.constant 0 : index
    %c0_6 = arith.constant 0 : index
    %4 = vector.load %arg7[%c0_5, %c0_6] : memref<1x32xf32, #tpu.memory_space<vmem>>, vector<1x32xf32>
    %5 = vector.broadcast %2 : vector<1x32xf32> to vector<8x32xf32>
    %6 = arith.addf %0, %5 : vector<8x32xf32>
    %c0_7 = arith.constant 0 : index
    %c0_8 = arith.constant 0 : index
    %7 = vector.load %arg2[%c0_7, %c0_8] : memref<32x128xbf16, #tpu.memory_space<vmem>>, vector<32x128xbf16>
    %c0_9 = arith.constant 0 : index
    %c0_10 = arith.constant 0 : index
    %8 = vector.load %arg3[%c0_9, %c0_10] : memref<1x128xf32, #tpu.memory_space<vmem>>, vector<1x128xf32>
    %cst = arith.constant dense<0.000000e+00> : vector<8x128xf32>
    %9 = tpu.matmul %1, %7, %cst {dimension_numbers = #tpu.dot_dimension_numbers<[1], [0], [0], [1], [0, 0, 1, 1], [], []>} : vector<8x32xbf16>, vector<32x128xbf16>, vector<8x128xf32> -> vector<8x128xf32>
    %10 = vector.broadcast %8 : vector<1x128xf32> to vector<8x128xf32>
    %11 = arith.addf %9, %10 : vector<8x128xf32>
    %cst_11 = arith.constant 5.000000e-01 : f32
    %12 = vector.broadcast %cst_11 : f32 to vector<8x128xf32>
    %13 = arith.mulf %12, %11 : vector<8x128xf32>
    %cst_12 = arith.constant 0.797884583 : f32
    %14 = vector.broadcast %cst_12 : f32 to vector<8x128xf32>
    %15 = arith.mulf %14, %11 : vector<8x128xf32>
    %cst_13 = arith.constant 4.471500e-02 : f32
    %16 = vector.broadcast %cst_13 : f32 to vector<8x128xf32>
    %17 = arith.mulf %16, %11 : vector<8x128xf32>
    %18 = arith.mulf %17, %11 : vector<8x128xf32>
    %cst_14 = arith.constant 1.000000e+00 : f32
    %19 = vector.broadcast %cst_14 : f32 to vector<8x128xf32>
    %20 = arith.addf %19, %18 : vector<8x128xf32>
    %21 = arith.mulf %15, %20 : vector<8x128xf32>
    %22 = math.tanh %21 : vector<8x128xf32>
    %cst_15 = arith.constant 1.000000e+00 : f32
    %23 = vector.broadcast %cst_15 : f32 to vector<8x128xf32>
    %24 = arith.addf %23, %22 : vector<8x128xf32>
    %25 = arith.mulf %13, %24 : vector<8x128xf32>
    %c0_16 = arith.constant 0 : index
    %c0_17 = arith.constant 0 : index
    %26 = vector.load %arg4[%c0_16, %c0_17] : memref<128x32xbf16, #tpu.memory_space<vmem>>, vector<128x32xbf16>
    %27 = arith.truncf %25 : vector<8x128xf32> to vector<8x128xbf16>
    %cst_18 = arith.constant dense<0.000000e+00> : vector<8x32xf32>
    %28 = tpu.matmul %27, %26, %cst_18 {dimension_numbers = #tpu.dot_dimension_numbers<[1], [0], [0], [1], [0, 0, 1, 1], [], []>} : vector<8x128xbf16>, vector<128x32xbf16>, vector<8x32xf32> -> vector<8x32xf32>
    %29 = arith.addf %6, %28 : vector<8x32xf32>
    %cst_19 = arith.constant dense<0.000000e+00> : vector<8xf32>
    %30 = vector.multi_reduction <add>, %29, %cst_19 [1] : vector<8x32xf32> to vector<8xf32>
    %31 = vector.shape_cast %30 : vector<8xf32> to vector<8x1xf32>
    %cst_20 = arith.constant 3.200000e+01 : f32
    %32 = vector.broadcast %cst_20 : f32 to vector<8x1xf32>
    %33 = arith.divf %31, %32 : vector<8x1xf32>
    %34 = vector.broadcast %33 : vector<8x1xf32> to vector<8x32xf32>
    %35 = arith.subf %29, %34 : vector<8x32xf32>
    %36 = arith.mulf %35, %35 : vector<8x32xf32>
    %cst_21 = arith.constant dense<0.000000e+00> : vector<8xf32>
    %37 = vector.multi_reduction <add>, %36, %cst_21 [1] : vector<8x32xf32> to vector<8xf32>
    %38 = vector.shape_cast %37 : vector<8xf32> to vector<8x1xf32>
    %cst_22 = arith.constant 3.200000e+01 : f32
    %39 = vector.broadcast %cst_22 : f32 to vector<8x1xf32>
    %40 = arith.divf %38, %39 : vector<8x1xf32>
    %cst_23 = arith.constant 9.99999974E-6 : f32
    %41 = vector.broadcast %cst_23 : f32 to vector<8x1xf32>
    %42 = arith.addf %40, %41 : vector<8x1xf32>
    %43 = math.rsqrt %42 : vector<8x1xf32>
    %44 = vector.broadcast %43 : vector<8x1xf32> to vector<8x32xf32>
    %45 = arith.mulf %35, %44 : vector<8x32xf32>
    %46 = vector.broadcast %3 : vector<1x32xf32> to vector<8x32xf32>
    %47 = arith.mulf %45, %46 : vector<8x32xf32>
    %48 = vector.broadcast %4 : vector<1x32xf32> to vector<8x32xf32>
    %49 = arith.addf %47, %48 : vector<8x32xf32>
    %c0_24 = arith.constant 0 : index
    %c0_25 = arith.constant 0 : index
    %50 = vector.load %arg8[%c0_24, %c0_25] : memref<8x32xf32, #tpu.memory_space<vmem>>, vector<8x32xf32>
    tpu.vector_store %arg8[%c0_24, %c0_25], %49 {strides = array<i32>} : memref<8x32xf32, #tpu.memory_space<vmem>>, vector<8x32xf32>,
    return
  }
  func.func @transform_0(%arg0: i32) -> (i32, i32) {
    %c0_i32 = arith.constant 0 : i32
    %c0_i32_0 = arith.constant 0 : i32
    return %arg0, %c0_i32 : i32, i32
  }
  func.func @transform_1(%arg0: i32) -> (i32, i32) {
    %c0_i32 = arith.constant 0 : i32
    %c0_i32_0 = arith.constant 0 : i32
    %c0_i32_1 = arith.constant 0 : i32
    return %c0_i32, %c0_i32_0 : i32, i32
  }
  func.func @transform_2(%arg0: i32) -> (i32, i32) {
    %c0_i32 = arith.constant 0 : i32
    %c0_i32_0 = arith.constant 0 : i32
    %c0_i32_1 = arith.constant 0 : i32
    return %c0_i32, %c0_i32_0 : i32, i32
  }
  func.func @transform_3(%arg0: i32) -> (i32, i32) {
    %c0_i32 = arith.constant 0 : i32
    %c0_i32_0 = arith.constant 0 : i32
    %c0_i32_1 = arith.constant 0 : i32
    return %c0_i32, %c0_i32_0 : i32, i32
  }
  func.func @transform_4(%arg0: i32) -> (i32, i32) {
    %c0_i32 = arith.constant 0 : i32
    %c0_i32_0 = arith.constant 0 : i32
    %c0_i32_1 = arith.constant 0 : i32
    return %c0_i32, %c0_i32_0 : i32, i32
  }
  func.func @transform_5(%arg0: i32) -> (i32, i32) {
    %c0_i32 = arith.constant 0 : i32
    %c0_i32_0 = arith.constant 0 : i32
    %c0_i32_1 = arith.constant 0 : i32
    return %c0_i32, %c0_i32_0 : i32, i32
  }
  func.func @transform_6(%arg0: i32) -> (i32, i32) {
    %c0_i32 = arith.constant 0 : i32
    %c0_i32_0 = arith.constant 0 : i32
    %c0_i32_1 = arith.constant 0 : i32
    return %c0_i32, %c0_i32_0 : i32, i32
  }
  func.func @transform_7(%arg0: i32) -> (i32, i32) {
    %c0_i32 = arith.constant 0 : i32
    %c0_i32_0 = arith.constant 0 : i32
    return %arg0, %c0_i32 : i32, i32
  }
}

</mosaic_0001>

<llo_original>
// kernel: tpu_custom_call.1
$region0: #{tpu_custom_call.1}
  #allocation0 [shape = 'u32[]', space=smem, size = 0x4, offset = 0x4, fixed_abs, tag = 'smem constant byte address 0x4 - core index']
  #allocation1 [shape = 'u32[144,128]{1,0:T(1,128)}', space=vmem, size = 0x12000, scoped, tag = 'internal scratch']
  %s0 = inlined_call_operand.vmem [shape: f32[16,32], index: 0, kind: input, shape index: {}]
  %s1 = inlined_call_operand.vmem [shape: bf16[32,128], index: 1, kind: input, shape index: {}]
  %s2 = inlined_call_operand.vmem [shape: f32[1,128], index: 2, kind: input, shape index: {}]
  %s3 = inlined_call_operand.vmem [shape: bf16[128,32], index: 3, kind: input, shape index: {}]
  %s4 = inlined_call_operand.vmem [shape: f32[1,32], index: 4, kind: input, shape index: {}]
  %s5 = inlined_call_operand.vmem [shape: f32[1,32], index: 5, kind: input, shape index: {}]
  %s6 = inlined_call_operand.vmem [shape: f32[1,32], index: 6, kind: input, shape index: {}]
  %s7 = inlined_call_operand.hbm [shape: f32[16,32], index: 7, kind: output, shape index: {}]
  %s8 = sld [smem:[#allocation0]]
  $region61: #{tpu_custom_call.1} parent=0
    _
  %s10 = ssub.s32 1, %s8
  %s11 = scalar_select 0, %s10, %s8
  $region1: #{tpu_custom_call.1} parent=0
    #allocation2 [shape = 'u8[8192]{0}', space=vmem, size = 0x2000, scoped, tag = 'output window, operand 0']
    #allocation3 [shape = 's32[2]{0}', space=sflag, size = 0x8, scoped, tag = 'scoped memory for tpu_custom_call.1']
    %12 = vsyncpa [#allocation3], 0
    %s13 = scalar_lea.sflag [#allocation3], 1
    %14 = vsyncpa %s13, 0
    loop: start=0, step=1, limit=4
    $region2: #{tpu_custom_call.1} parent=1 // loop_pre_header
      _
    $region3: #{tpu_custom_call.1} parent=1 // loop_header
      %s16 = sphi 0, %s20
      %p17 = scmp.ge.s32.totalorder %s16, 4
      %s26 = sphi 0, %s28
      %s29 = sphi 0, %s26
      %s30 = sphi 0, %s29
      %s46 = sphi 0, %s30
      %s50 = sphi 0, %s50
      %s52 = sphi 0, %s50
      %s53 = sphi 0, %s52
      %s67 = sphi 0, %s53
      %s71 = sphi 0, %s71
      %s73 = sphi 0, %s71
      %s74 = sphi 0, %s73
      %s88 = sphi 0, %s74
      %s92 = sphi 0, %s92
      %s94 = sphi 0, %s92
      %s95 = sphi 0, %s94
      %s109 = sphi 0, %s95
      %s113 = sphi 0, %s113
      %s115 = sphi 0, %s113
      %s116 = sphi 0, %s115
      %s130 = sphi 0, %s116
      %s134 = sphi 0, %s134
      %s136 = sphi 0, %s134
      %s137 = sphi 0, %s136
      %s151 = sphi 0, %s137
      %s155 = sphi 0, %s155
      %s157 = sphi 0, %s155
      %s158 = sphi 0, %s157
      %s172 = sphi 0, %s158
      %s178 = sphi 0, %s180
      %s181 = sphi 0, %s178
      %s182 = sphi 0, %s181
      %s198 = sphi 0, %s182
    $region4: #{tpu_custom_call.1} parent=1 // loop_header_branch
      %19 = sbr.rel (%p17) target = $region8
    $region5: #{tpu_custom_call.1} parent=1 // loop_body
      %s21 = ssub.s32 %s16, 1
      %s22 = ssub.s32 %s16, 2
      %s23 = sadd.s32 %s16, 1
      %s24 = ssub.s32 %s16, %s23
      %p25 = scmp.eq.s32.totalorder %s24, 0
      %s27 = sadd.s32 %s26, 1
      %s28 = scalar_select %p25, %s26, %s27
      %p31 = pneg %p25
      %p32 = scmp.eq.s32.totalorder %s16, 1
      %p33 = por %p31, %p32
      %p34 = scmp.ne.s32.totalorder %s26, %s29
      %p35 = scmp.eq.s32.totalorder %s16, 0
      %p36 = por %p34, %p35
      %p37 = scmp.ne.s32.totalorder %s26, %s29
      %p38 = scmp.eq.s32.totalorder %s21, 1
      %p39 = por %p37, %p38
      %p40 = scmp.ne.s32.totalorder %s29, %s30
      %p41 = scmp.eq.s32.totalorder %s21, 0
      %p42 = por %p40, %p41
      %p43 = scmp.ne.s32.totalorder %s29, %s30
      %p44 = scmp.eq.s32.totalorder %s22, 1
      %p45 = por %p43, %p44
      %p47 = scmp.ne.s32.totalorder %s30, %s46
      %p48 = scmp.eq.s32.totalorder %s22, 0
      %p49 = por %p47, %p48
      %s51 = sadd.s32 %s50, 1
      %p54 = scmp.eq.s32.totalorder %s16, 1
      %p55 = scmp.ne.s32.totalorder %s50, %s52
      %p56 = scmp.eq.s32.totalorder %s16, 0
      %p57 = por %p55, %p56
      %p58 = scmp.ne.s32.totalorder %s50, %s52
      %p59 = scmp.eq.s32.totalorder %s21, 1
      %p60 = por %p58, %p59
      %p61 = scmp.ne.s32.totalorder %s52, %s53
      %p62 = scmp.eq.s32.totalorder %s21, 0
      %p63 = por %p61, %p62
      %p64 = scmp.ne.s32.totalorder %s52, %s53
      %p65 = scmp.eq.s32.totalorder %s22, 1
      %p66 = por %p64, %p65
      %p68 = scmp.ne.s32.totalorder %s53, %s67
      %p69 = scmp.eq.s32.totalorder %s22, 0
      %p70 = por %p68, %p69
      %s72 = sadd.s32 %s71, 1
      %p75 = scmp.eq.s32.totalorder %s16, 1
      %p76 = scmp.ne.s32.totalorder %s71, %s73
      %p77 = scmp.eq.s32.totalorder %s16, 0
      %p78 = por %p76, %p77
      %p79 = scmp.ne.s32.totalorder %s71, %s73
      %p80 = scmp.eq.s32.totalorder %s21, 1
      %p81 = por %p79, %p80
      %p82 = scmp.ne.s32.totalorder %s73, %s74
      %p83 = scmp.eq.s32.totalorder %s21, 0
      %p84 = por %p82, %p83
      %p85 = scmp.ne.s32.totalorder %s73, %s74
      %p86 = scmp.eq.s32.totalorder %s22, 1
      %p87 = por %p85, %p86
      %p89 = scmp.ne.s32.totalorder %s74, %s88
      %p90 = scmp.eq.s32.totalorder %s22, 0
      %p91 = por %p89, %p90
      %s93 = sadd.s32 %s92, 1
      %p96 = scmp.eq.s32.totalorder %s16, 1
      %p97 = scmp.ne.s32.totalorder %s92, %s94
      %p98 = scmp.eq.s32.totalorder %s16, 0
      %p99 = por %p97, %p98
      %p100 = scmp.ne.s32.totalorder %s92, %s94
      %p101 = scmp.eq.s32.totalorder %s21, 1
      %p102 = por %p100, %p101
      %p103 = scmp.ne.s32.totalorder %s94, %s95
      %p104 = scmp.eq.s32.totalorder %s21, 0
      %p105 = por %p103, %p104
      %p106 = scmp.ne.s32.totalorder %s94, %s95
      %p107 = scmp.eq.s32.totalorder %s22, 1
      %p108 = por %p106, %p107
      %p110 = scmp.ne.s32.totalorder %s95, %s109
      %p111 = scmp.eq.s32.totalorder %s22, 0
      %p112 = por %p110, %p111
      %s114 = sadd.s32 %s113, 1
      %p117 = scmp.eq.s32.totalorder %s16, 1
      %p118 = scmp.ne.s32.totalorder %s113, %s115
      %p119 = scmp.eq.s32.totalorder %s16, 0
      %p120 = por %p118, %p119
      %p121 = scmp.ne.s32.totalorder %s113, %s115
      %p122 = scmp.eq.s32.totalorder %s21, 1
      %p123 = por %p121, %p122
      %p124 = scmp.ne.s32.totalorder %s115, %s116
      %p125 = scmp.eq.s32.totalorder %s21, 0
      %p126 = por %p124, %p125
      %p127 = scmp.ne.s32.totalorder %s115, %s116
      %p128 = scmp.eq.s32.totalorder %s22, 1
      %p129 = por %p127, %p128
      %p131 = scmp.ne.s32.totalorder %s116, %s130
      %p132 = scmp.eq.s32.totalorder %s22, 0
      %p133 = por %p131, %p132
      %s135 = sadd.s32 %s134, 1
      %p138 = scmp.eq.s32.totalorder %s16, 1
      %p139 = scmp.ne.s32.totalorder %s134, %s136
      %p140 = scmp.eq.s32.totalorder %s16, 0
      %p141 = por %p139, %p140
      %p142 = scmp.ne.s32.totalorder %s134, %s136
      %p143 = scmp.eq.s32.totalorder %s21, 1
      %p144 = por %p142, %p143
      %p145 = scmp.ne.s32.totalorder %s136, %s137
      %p146 = scmp.eq.s32.totalorder %s21, 0
      %p147 = por %p145, %p146
      %p148 = scmp.ne.s32.totalorder %s136, %s137
      %p149 = scmp.eq.s32.totalorder %s22, 1
      %p150 = por %p148, %p149
      %p152 = scmp.ne.s32.totalorder %s137, %s151
      %p153 = scmp.eq.s32.totalorder %s22, 0
      %p154 = por %p152, %p153
      %s156 = sadd.s32 %s155, 1
      %p159 = scmp.eq.s32.totalorder %s16, 1
      %p160 = scmp.ne.s32.totalorder %s155, %s157
      %p161 = scmp.eq.s32.totalorder %s16, 0
      %p162 = por %p160, %p161
      %p163 = scmp.ne.s32.totalorder %s155, %s157
      %p164 = scmp.eq.s32.totalorder %s21, 1
      %p165 = por %p163, %p164
      %p166 = scmp.ne.s32.totalorder %s157, %s158
      %p167 = scmp.eq.s32.totalorder %s21, 0
      %p168 = por %p166, %p167
      %p169 = scmp.ne.s32.totalorder %s157, %s158
      %p170 = scmp.eq.s32.totalorder %s22, 1
      %p171 = por %p169, %p170
      %p173 = scmp.ne.s32.totalorder %s158, %s172
      %p174 = scmp.eq.s32.totalorder %s22, 0
      %p175 = por %p173, %p174
      %s176 = ssub.s32 %s16, %s23
      %p177 = scmp.eq.s32.totalorder %s176, 0
      %s179 = sadd.s32 %s178, 1
      %s180 = scalar_select %p177, %s178, %s179
      %p183 = pneg %p177
      %p184 = scmp.eq.s32.totalorder %s16, 1
      %p185 = por %p183, %p184
      %p186 = scmp.ne.s32.totalorder %s178, %s181
      %p187 = scmp.eq.s32.totalorder %s16, 0
      %p188 = por %p186, %p187
      %p189 = scmp.ne.s32.totalorder %s178, %s181
      %p190 = scmp.eq.s32.totalorder %s21, 1
      %p191 = por %p189, %p190
      %p192 = scmp.ne.s32.totalorder %s181, %s182
      %p193 = scmp.eq.s32.totalorder %s21, 0
      %p194 = por %p192, %p193
      %p195 = scmp.ne.s32.totalorder %s181, %s182
      %p196 = scmp.eq.s32.totalorder %s22, 1
      %p197 = por %p195, %p196
      %p199 = scmp.ne.s32.totalorder %s182, %s198
      %p200 = scmp.eq.s32.totalorder %s22, 0
      %p201 = por %p199, %p200
      %p202 = scmp.le.s32.totalorder 1, %s16
      %p203 = scmp.lt.s32.totalorder %s16, 3
      %p204 = pnand %p202, %p203
      %p205 = pneg %p204
      // Predicated region
      $region9: #{tpu_custom_call.1} parent=5 // pred_check
        _
      $region10: #{tpu_custom_call.1} parent=5 // pred_check_branch
        %207 = sbr.rel (%p204) target = $region12
      $region11: #{tpu_custom_call.1} parent=5 // pred_region
        %s208 = ssub.s32 %s16, 1
        // Predicated region
        $region13: #{tpu_custom_call.1} parent=11 // pred_check
          %p209 = pneg %p63
        $region14: #{tpu_custom_call.1} parent=11 // pred_check_branch
          %211 = sbr.rel (%p209) target = $region16
        $region15: #{tpu_custom_call.1} parent=11 // pred_region
          _
        $region16: #{tpu_custom_call.1} parent=11 // pred_fallthru
          _
        // Predicated region
        $region17: #{tpu_custom_call.1} parent=11 // pred_check
          %p212 = pneg %p84
        $region18: #{tpu_custom_call.1} parent=11 // pred_check_branch
          %214 = sbr.rel (%p212) target = $region20
        $region19: #{tpu_custom_call.1} parent=11 // pred_region
          _
        $region20: #{tpu_custom_call.1} parent=11 // pred_fallthru
          _
        // Predicated region
        $region21: #{tpu_custom_call.1} parent=11 // pred_check
          %p215 = pneg %p105
        $region22: #{tpu_custom_call.1} parent=11 // pred_check_branch
          %217 = sbr.rel (%p215) target = $region24
        $region23: #{tpu_custom_call.1} parent=11 // pred_region
          _
        $region24: #{tpu_custom_call.1} parent=11 // pred_fallthru
          _
        // Predicated region
        $region25: #{tpu_custom_call.1} parent=11 // pred_check
          %p218 = pneg %p126
        $region26: #{tpu_custom_call.1} parent=11 // pred_check_branch
          %220 = sbr.rel (%p218) target = $region28
        $region27: #{tpu_custom_call.1} parent=11 // pred_region
          _
        $region28: #{tpu_custom_call.1} parent=11 // pred_fallthru
          _
        // Predicated region
        $region29: #{tpu_custom_call.1} parent=11 // pred_check
          %p221 = pneg %p147
        $region30: #{tpu_custom_call.1} parent=11 // pred_check_branch
          %223 = sbr.rel (%p221) target = $region32
        $region31: #{tpu_custom_call.1} parent=11 // pred_region
          _
        $region32: #{tpu_custom_call.1} parent=11 // pred_fallthru
          _
        // Predicated region
        $region33: #{tpu_custom_call.1} parent=11 // pred_check
          %p224 = pneg %p168
        $region34: #{tpu_custom_call.1} parent=11 // pred_check_branch
          %226 = sbr.rel (%p224) target = $region36
        $region35: #{tpu_custom_call.1} parent=11 // pred_region
          _
        $region36: #{tpu_custom_call.1} parent=11 // pred_fallthru
          _
      $region12: #{tpu_custom_call.1} parent=5 // pred_fallthru
        _
      %p227 = scmp.lt.s32.totalorder %s16, 2
      // Predicated region
      $region37: #{tpu_custom_call.1} parent=5 // pred_check
        %p228 = pneg %p227
      $region38: #{tpu_custom_call.1} parent=5 // pred_check_branch
        %230 = sbr.rel (%p228) target = $region40
      $region39: #{tpu_custom_call.1} parent=5 // pred_region
        // Predicated region
        $region41: #{tpu_custom_call.1} parent=39 // pred_check
          %p231 = pneg %p36
        $region42: #{tpu_custom_call.1} parent=39 // pred_check_branch
          %233 = sbr.rel (%p231) target = $region44
        $region43: #{tpu_custom_call.1} parent=39 // pred_region
          %p234 = scmp.lt.s32.totalorder %s16, 1
          %s235 = scalar_select %p234, %s16, 1
          %s236 = smul.addr %s235, 8
          %s237 = scalar_lea.vmem %s0, %s236
        $region44: #{tpu_custom_call.1} parent=39 // pred_fallthru
          _
      $region40: #{tpu_custom_call.1} parent=5 // pred_fallthru
        _
      %p238 = scmp.le.s32.totalorder 1, %s16
      %p239 = scmp.lt.s32.totalorder %s16, 3
      %p240 = pnand %p238, %p239
      %p241 = pneg %p240
      // Predicated region
      $region45: #{tpu_custom_call.1} parent=5 // pred_check
        _
      $region46: #{tpu_custom_call.1} parent=5 // pred_check_branch
        %243 = sbr.rel (%p240) target = $region48
      $region47: #{tpu_custom_call.1} parent=5 // pred_region
        %s244 = ssub.s32 %s16, 1
        %p245 = scmp.lt.s32.totalorder %s21, 1
        %s246 = scalar_select %p245, %s21, 1
        %s247 = smul.addr %s246, 8
        %s248 = scalar_lea.vmem %s0, %s247
        %p249 = pneg %p42
        %p250 = pneg %p39
        %p251 = pneg %p63
        %p252 = pneg %p60
        %p253 = pneg %p84
        %p254 = pneg %p81
        %p255 = pneg %p105
        %p256 = pneg %p102
        %p257 = pneg %p126
        %p258 = pneg %p123
        %p259 = pneg %p147
        %p260 = pneg %p144
        %p261 = pneg %p168
        %p262 = pneg %p165
        %p263 = pneg %p194
        %p264 = pneg %p191
        %s265 = sand.u32 %s181, 1
        %s266 = scalar_lea.sflag [#allocation3], %s265
        %s267 = sand.u32 %s181, 1
        %s268 = smul.addr %s267, 8
        %s269 = scalar_lea.vmem [#allocation2], %s268
        %p270 = scmp.lt.s32.totalorder %s21, 1
        %s271 = scalar_select %p270, %s21, 1
        %s272 = smul.addr %s271, 8
        %s273 = scalar_lea.vmem %s0, %s272
        %v275 = vld [vmem:[%s273] sm:$0xff]
        %v276 = vpack.c.bf16 %v275, %v275
        %v277 = vld [vmem:[%s4] sm:$0x1]
        %v278 = vld [vmem:[%s5] sm:$0x1]
        %v279 = vld [vmem:[%s6] sm:$0x1]
        %v281 = vlaneseq
        %v282 = vshrl.u32 %v281, 7
        %v283 = vsub.s32 0, %v282
        %v284 = vrot.slane %v277, %v283
        %v286 = vadd.f32 %v275, %v284
        %v287 = vld [vmem:[%s1] sm:$0xf]
        %v288 = vld [vmem:[%s1 + $0x4] sm:$0xf]
        %v289 = vld [vmem:[%s1 + $0x8] sm:$0xf]
        %v290 = vld [vmem:[%s1 + $0xc] sm:$0xf]
        %v291 = vld [vmem:[%s2] sm:$0x1]
        %v293 = vlaneseq
        %v294 = vshrl.u32 %v293, 7
        %v295 = vsub.s32 0, %v294
        %v296 = vrot.slane %v291, %v295
        %v302 = vunpack.c.l.b16 %v287
        %v303 = vunpack.c.l.b16 %v288
        %v304 = vunpack.c.l.b16 %v289
        %v305 = vunpack.c.l.b16 %v290
        %v306 = vpack.c.b16 %v303, %v302
        %v307 = vpack.c.b16 %v305, %v304
        %vm310 = vcmask 261120
        %v312 = vsel %vm310, %v276, 0
        %314 = vmatprep.subr.bf16.mxu0 0
        %315 = vmatpush1.bf16.msra.mxu0 %v306
        %316 = vmatprep.subr.bf16.mxu0 0
        %317 = vmatpush1.bf16.msra.mxu0 %v307
        %318 = vmatprep.subr.bf16.mxu0 0
        %319 = vmatpush1.bf16.msra.mxu0 0
        %320 = vmatprep.subr.bf16.mxu0 0
        %321 = vmatpush1.bf16.msra.mxu0 0
        %322 = vmatprep.subr.bf16.mxu0 0
        %323 = vmatpush1.bf16.msra.mxu0 0
        %324 = vmatprep.subr.bf16.mxu0 0
        %325 = vmatpush1.bf16.msra.mxu0 0
        %326 = vmatprep.subr.bf16.mxu0 0
        %327 = vmatpush1.bf16.msra.mxu0 0
        %328 = vmatprep.subr.bf16.mxu0 0
        %329 = vmatpush1.bf16.msra.mxu0 0
        %330 = vmatprep.subr.bf16.mxu0 0
        %331 = vmatpush1.bf16.msra.mxu0 0
        %332 = vmatprep.subr.bf16.mxu0 0
        %333 = vmatpush1.bf16.msra.mxu0 0
        %334 = vmatprep.subr.bf16.mxu0 0
        %335 = vmatpush1.bf16.msra.mxu0 0
        %336 = vmatprep.subr.bf16.mxu0 0
        %337 = vmatpush1.bf16.msra.mxu0 0
        %338 = vmatprep.subr.bf16.mxu0 0
        %339 = vmatpush1.bf16.msra.mxu0 0
        %340 = vmatprep.subr.bf16.mxu0 0
        %341 = vmatpush1.bf16.msra.mxu0 0
        %342 = vmatprep.subr.bf16.mxu0 0
        %343 = vmatpush1.bf16.msra.mxu0 0
        %344 = vmatprep.subr.bf16.mxu0 0
        %345 = vmatpush1.bf16.msra.mxu0 0
        %346 = vmatprep.mubr.bf16.mxu0 0
        %347 = vmatmul.mubr.bf16.gmra.mrb[0].mxu0 %v312
        %v348 = vpop.f32.mrb[0].mxu0
        %v349 = vadd.f32 %v296, %v348
        %v350 = vpop.f32.mrb[0].mxu0
        %v351 = vpop.f32.mrb[0].mxu0
        %v352 = vpop.f32.mrb[0].mxu0
        %353 = vdwg.mxu0
        %v354 = vmul.f32 %v349, 0.5
        %v355 = vmul.f32 %v349, 0.7978846
        %v356 = vmul.f32 %v349, 0.044715
        %v357 = vmul.f32 %v356, %v349
        %v358 = vadd.f32 %v357, 1.0
        %v359 = vmul.f32 %v355, %v358
        %v360 = vtanh.pop %v359
        %v361 = vadd.f32 %v360, 1.0
        %v362 = vmul.f32 %v354, %v361
        %v363 = vld [vmem:[%s3] sm:$0xf]
        %v364 = vld [vmem:[%s3 + $0x4] sm:$0xf]
        %v365 = vld [vmem:[%s3 + $0x8] sm:$0xf]
        %v366 = vld [vmem:[%s3 + $0xc] sm:$0xf]
        %v367 = vld [vmem:[%s3 + $0x10] sm:$0xf]
        %v368 = vld [vmem:[%s3 + $0x14] sm:$0xf]
        %v369 = vld [vmem:[%s3 + $0x18] sm:$0xf]
        %v370 = vld [vmem:[%s3 + $0x1c] sm:$0xf]
        %v371 = vld [vmem:[%s3 + $0x20] sm:$0xf]
        %v372 = vld [vmem:[%s3 + $0x24] sm:$0xf]
        %v373 = vld [vmem:[%s3 + $0x28] sm:$0xf]
        %v374 = vld [vmem:[%s3 + $0x2c] sm:$0xf]
        %v375 = vld [vmem:[%s3 + $0x30] sm:$0xf]
        %v376 = vld [vmem:[%s3 + $0x34] sm:$0xf]
        %v377 = vld [vmem:[%s3 + $0x38] sm:$0xf]
        %v378 = vld [vmem:[%s3 + $0x3c] sm:$0xf]
        %v379 = vpack.c.bf16 %v362, %v362
        %v396 = vunpack.c.l.b16 %v363
        %v397 = vunpack.c.l.b16 %v364
        %v398 = vunpack.c.l.b16 %v365
        %v399 = vunpack.c.l.b16 %v366
        %v400 = vunpack.c.l.b16 %v367
        %v401 = vunpack.c.l.b16 %v368
        %v402 = vunpack.c.l.b16 %v369
        %v403 = vunpack.c.l.b16 %v370
        %v404 = vunpack.c.l.b16 %v371
        %v405 = vunpack.c.l.b16 %v372
        %v406 = vunpack.c.l.b16 %v373
        %v407 = vunpack.c.l.b16 %v374
        %v408 = vunpack.c.l.b16 %v375
        %v409 = vunpack.c.l.b16 %v376
        %v410 = vunpack.c.l.b16 %v377
        %v411 = vunpack.c.l.b16 %v378
        %v412 = vpack.c.b16 %v397, %v396
        %v413 = vpack.c.b16 %v399, %v398
        %v414 = vpack.c.b16 %v401, %v400
        %v415 = vpack.c.b16 %v403, %v402
        %v416 = vpack.c.b16 %v405, %v404
        %v417 = vpack.c.b16 %v407, %v406
        %v418 = vpack.c.b16 %v409, %v408
        %v419 = vpack.c.b16 %v411, %v410
        %428 = vmatprep.subr.bf16.mxu0 0
        %429 = vmatpush1.bf16.msra.mxu0 %v412
        %430 = vmatprep.subr.bf16.mxu0 0
        %431 = vmatpush1.bf16.msra.mxu0 %v413
        %432 = vmatprep.subr.bf16.mxu0 0
        %433 = vmatpush1.bf16.msra.mxu0 %v414
        %434 = vmatprep.subr.bf16.mxu0 0
        %435 = vmatpush1.bf16.msra.mxu0 %v415
        %436 = vmatprep.subr.bf16.mxu0 0
        %437 = vmatpush1.bf16.msra.mxu0 %v416
        %438 = vmatprep.subr.bf16.mxu0 0
        %439 = vmatpush1.bf16.msra.mxu0 %v417
        %440 = vmatprep.subr.bf16.mxu0 0
        %441 = vmatpush1.bf16.msra.mxu0 %v418
        %442 = vmatprep.subr.bf16.mxu0 0
        %443 = vmatpush1.bf16.msra.mxu0 %v419
        %444 = vmatprep.subr.bf16.mxu0 0
        %445 = vmatpush1.bf16.msra.mxu0 0
        %446 = vmatprep.subr.bf16.mxu0 0
        %447 = vmatpush1.bf16.msra.mxu0 0
        %448 = vmatprep.subr.bf16.mxu0 0
        %449 = vmatpush1.bf16.msra.mxu0 0
        %450 = vmatprep.subr.bf16.mxu0 0
        %451 = vmatpush1.bf16.msra.mxu0 0
        %452 = vmatprep.subr.bf16.mxu0 0
        %453 = vmatpush1.bf16.msra.mxu0 0
        %454 = vmatprep.subr.bf16.mxu0 0
        %455 = vmatpush1.bf16.msra.mxu0 0
        %456 = vmatprep.subr.bf16.mxu0 0
        %457 = vmatpush1.bf16.msra.mxu0 0
        %458 = vmatprep.subr.bf16.mxu0 0
        %459 = vmatpush1.bf16.msra.mxu0 0
        %460 = vmatprep.mubr.bf16.mxu0 0
        %461 = vmatmul.mubr.bf16.gmra.mrb[0].mxu0 %v379
        %v462 = vpop.f32.mrb[0].mxu0
        %v463 = vadd.f32 0.0, %v462
        %v464 = vpop.f32.mrb[0].mxu0
        %v465 = vpop.f32.mrb[0].mxu0
        %v466 = vpop.f32.mrb[0].mxu0
        %467 = vdwg.mxu0
        %v468 = vadd.f32 %v286, %v463
        %v469 = vsel %vm310, %v468, 0.0
        %470 = vadd.xlane.f32.xlu0 %v469
        %v471 = vpop.xlane.xlu0 %470
        %v472 = vrcp.pop 32.0
        %v473 = vmul.f32 %v471, %v472
        %v474 = vsub.f32 %v468, %v473
        %v475 = vmul.f32 %v474, %v474
        %v476 = vsel %vm310, %v475, 0.0
        %477 = vadd.xlane.f32.xlu0 %v476
        %v478 = vpop.xlane.xlu0 %477
        %v479 = vmul.f32 %v478, %v472
        %v480 = vadd.f32 %v479, 1e-05
        %v481 = vrsqrt.pop %v480
        %v482 = vmul.f32 %v474, %v481
        %v484 = vlaneseq
        %v485 = vshrl.u32 %v484, 7
        %v486 = vsub.s32 0, %v485
        %v487 = vrot.slane %v278, %v486
        %v489 = vmul.f32 %v482, %v487
        %v491 = vlaneseq
        %v492 = vshrl.u32 %v491, 7
        %v493 = vsub.s32 0, %v492
        %v494 = vrot.slane %v279, %v493
        %v496 = vadd.f32 %v489, %v494
        %497 = vst.msk [vmem:[%s269] sm:$0xff] %vm310, %v496
        %s498 = sand.u32 %s181, 1
        %s499 = scalar_lea.sflag [#allocation3], %s498
        %s500 = sand.u32 %s181, 1
        %s501 = smul.addr %s500, 8
        %s502 = scalar_lea.vmem [#allocation2], %s501
        // Predicated region
        $region49: #{tpu_custom_call.1} parent=47 // pred_check
          %p503 = pneg %p191
        $region50: #{tpu_custom_call.1} parent=47 // pred_check_branch
          %505 = sbr.rel (%p503) target = $region52
        $region51: #{tpu_custom_call.1} parent=47 // pred_region
          %s507 = ssub.s32 128, 128
          %508 = vsyncadd %s499, %s507
          %s509 = smul.addr %s21, 128
          %s510 = scalar_lea.hbm %s7, %s509
          %s512 = sshll.u32 %s502, 4
          %s513 = int_to_ptr.vmem [resolvable:$true] %s512
          %515 = dma.vmem_to_hbm [thread:$0]  %s513, 128, %s510, %s499
        $region52: #{tpu_custom_call.1} parent=47 // pred_fallthru
          _
      $region48: #{tpu_custom_call.1} parent=5 // pred_fallthru
        _
      %p516 = scmp.le.s32.totalorder 2, %s16
      // Predicated region
      $region53: #{tpu_custom_call.1} parent=5 // pred_check
        %p517 = pneg %p516
      $region54: #{tpu_custom_call.1} parent=5 // pred_check_branch
        %519 = sbr.rel (%p517) target = $region56
      $region55: #{tpu_custom_call.1} parent=5 // pred_region
        %s520 = ssub.s32 %s16, 2
        // Predicated region
        $region57: #{tpu_custom_call.1} parent=55 // pred_check
          %p521 = pneg %p197
        $region58: #{tpu_custom_call.1} parent=55 // pred_check_branch
          %523 = sbr.rel (%p521) target = $region60
        $region59: #{tpu_custom_call.1} parent=55 // pred_region
          %s524 = sand.u32 %s182, 1
          %s525 = scalar_lea.sflag [#allocation3], %s524
          %s526 = sand.u32 %s182, 1
          %s527 = smul.addr %s526, 8
          %s528 = scalar_lea.vmem [#allocation2], %s527
          %529 = dma.done %s525, 128
        $region60: #{tpu_custom_call.1} parent=55 // pred_fallthru
          _
      $region56: #{tpu_custom_call.1} parent=5 // pred_fallthru
        _
    $region6: #{tpu_custom_call.1} parent=1 // loop_footer
      %s20 = sadd.s32 1, %s16
    $region7: #{tpu_custom_call.1} parent=1 // loop_footer_branch
      %15 = sbr.rel target = $region3
    $region8: #{tpu_custom_call.1} parent=1 // loop_exit
      _
    %530 = vsyncpa [#allocation3], 1
    %s531 = scalar_lea.sflag [#allocation3], 1
    %532 = vsyncpa %s531, 1

</llo_original>
